<compile_context>
chip_gen: v5e
topology: v5e:2x2
jax: 0.10.0
libtpu: 0.0.40
codegen_flags: <defaults>
</compile_context>

<pallas_src>
import functools

import jax
import jax.numpy as jnp
from jax.experimental import pallas as pl
from jax.experimental.pallas import tpu as pltpu


def _partial_sq_sum_kernel(*refs, row_tile, total_rows, weighted, need_mask,
                           native_diff):
    """One grid step: reduce a (row_tile, HW) tile of squared (weighted)
    prediction errors into this step's (1, HW) lane-dense partial-sum block."""
    if weighted:
        pred_ref, gt_ref, w_ref, out_ref = refs
    else:
        pred_ref, gt_ref, out_ref = refs

    if native_diff:
        # bf16 VALU subtract (v6e/v7x): packed [16,128] vregs halve vld/VALU
        # work for the diff temp; HBM traffic is unchanged.
        d = (pred_ref[...] - gt_ref[...]).astype(jnp.float32)
    else:
        # Upcast after the load so HBM traffic stays in the native dtype.
        d = pred_ref[...].astype(jnp.float32) - gt_ref[...].astype(jnp.float32)

    if weighted:
        # BlockSpec-tiled (row_tile, 1) weight block — no dynamic sublane slice,
        # no padded VMEM-resident weight array.
        d = d * w_ref[...].astype(jnp.float32)

    sq = d * d

    if need_mask:
        # cdiv grid: zero the rows of the (padded) last block that lie past R.
        row0 = pl.program_id(0) * row_tile
        row_ids = jax.lax.broadcasted_iota(jnp.int32, (row_tile, 1), 0) + row0
        sq = jnp.where(row_ids < total_rows, sq, 0.0)

    # Sublane-axis reduction only (cheap); columns stay lane-dense.
    out_ref[...] = jnp.sum(sq, axis=0, keepdims=True)   # (1, HW) f32


def _tpu_params():
    """Per-generation budgets:
    (per_pipeline_buffer_bytes, default_scoped_vmem, physical_vmem, bf16_valu)."""
    kind = ""
    try:
        kind = jax.devices()[0].device_kind.lower()
    except Exception:
        pass

    if ("v5 lite" in kind) or ("v5e" in kind) or ("v5lite" in kind):
        params = (3_500_000, 16 << 20, 128 << 20, False)   # v5e: 16 MiB default scoped
    elif "v6" in kind:
        params = (7 << 20, 32 << 20, 128 << 20, True)      # v6e: larger tiles, 32 MiB scoped
    elif "v7" in kind:
        params = (4 << 20, 32 << 20, 64 << 20, True)       # v7x: 64 MiB physical VMEM
    else:
        # Unknown generation (v4/v5p/interpret): conservative everywhere.
        params = (3_500_000, 16 << 20, 64 << 20, False)

    per_buf, default_scoped, physical, bf16_valu = params
    try:
        physical = int(pltpu.get_tpu_info().vmem_capacity_bytes)
    except Exception:
        pass
    return per_buf, default_scoped, physical, bf16_valu


def _pick_row_tile(num_rows, hw, itemsize, per_buffer_budget, min_steps=2):
    """Row tile: multiple of 8, one input buffer <= per_buffer_budget, and
    (when there are enough rows) small enough that the 1-D grid has at least
    `min_steps` steps so both v7x TensorCores get work."""
    if num_rows < 16:
        return num_rows                      # full row extent: single step, no mask

    cap = per_buffer_budget // max(1, hw * itemsize)
    cap = max(8, (cap // 8) * 8)

    # Largest multiple-of-8 tile that still yields >= min_steps grid steps.
    target = -(-num_rows // min_steps)                 # ceil(num_rows / min_steps)
    target = ((target + 7) // 8) * 8
    while target > 8 and -(-num_rows // target) < min_steps:
        target -= 8

    return max(8, min(cap, target))


def heatmap_mse_loss(output, target, target_weight, has_valid=True):
    """output/target: (B, J, H, W) heatmaps (any float dtype);
    target_weight: (B, J, 1). Returns scalar float32 loss."""
    B, J, H, W = output.shape
    HW = H * W
    R = B * J

    per_buf, default_scoped, physical, bf16_valu = _tpu_params()

    # Contiguous reshapes only — no transpose, no HBM-size dtype copies.
    pred = output.reshape(R, HW)
    gt = target.reshape(R, HW)

    itemsize = max(jnp.dtype(pred.dtype).itemsize, jnp.dtype(gt.dtype).itemsize)
    tr = _pick_row_tile(R, HW, itemsize, per_buf, min_steps=2)
    nt = -(-R // tr)                     # cdiv grid; padded rows masked in-kernel
    need_mask = (R % tr) != 0
    native_diff = bool(
        bf16_valu
        and pred.dtype == jnp.bfloat16
        and gt.dtype == jnp.bfloat16
    )

    in_specs = [
        pl.BlockSpec((tr, HW), lambda i: (i, 0)),
        pl.BlockSpec((tr, HW), lambda i: (i, 0)),
    ]
    args = [pred, gt]
    if has_valid:
        w = target_weight.reshape(R, 1).astype(jnp.float32)
        # Tiled with the heatmaps: <2 KB per-step DMA, fully pipeline-hidden.
        in_specs.append(pl.BlockSpec((tr, 1), lambda i: (i, 0)))
        args.append(w)

    # Rough VMEM footprint: heatmap inputs x 2 buffers, (1,HW) out blocks
    # (padded to 8 sublanes) x 2, (tr,1) weight blocks (padded to 128 lanes) x 2.
    vmem_need = 2 * 2 * tr * HW * itemsize + 2 * 8 * HW * 4
    if has_valid:
        vmem_need += 2 * tr * 128 * 4

    cparams = dict(dimension_semantics=("parallel",))
    if vmem_need > default_scoped:
        limit = int(vmem_need * 1.25) + (2 << 20)
        cparams["vmem_limit_bytes"] = int(min(limit, physical - (2 << 20)))

    # Advisory cost estimate (helps XLA schedule neighbors around the kernel).
    bytes_accessed = int(
        pred.size * jnp.dtype(pred.dtype).itemsize
        + gt.size * jnp.dtype(gt.dtype).itemsize
        + (R * 4 if has_valid else 0)
        + nt * HW * 4
    )
    flops = int((3 if has_valid else 2) * R * HW + nt * HW)

    partials = pl.pallas_call(
        functools.partial(
            _partial_sq_sum_kernel,
            row_tile=tr,
            total_rows=R,
            weighted=has_valid,
            need_mask=need_mask,
            native_diff=native_diff,
        ),
        out_shape=jax.ShapeDtypeStruct((nt, 1, HW), jnp.float32),
        grid_spec=pltpu.PrefetchScalarGridSpec(
            num_scalar_prefetch=0,
            grid=(nt,),
            in_specs=in_specs,
            out_specs=pl.BlockSpec((None, 1, HW), lambda i: (i, 0, 0)),
        ),
        compiler_params=pltpu.CompilerParams(**cparams),
        cost_estimate=pl.CostEstimate(
            flops=flops, transcendentals=0, bytes_accessed=bytes_accessed),
    )(*args)

    scale = 0.5 / float(J * B * HW)
    return jnp.sum(partials) * jnp.float32(scale)


def _reference_loss(output, target, target_weight, has_valid=True):
    B, J, H, W = output.shape
    pred = output.reshape(B, J, -1).astype(jnp.float32)
    gt = target.reshape(B, J, -1).astype(jnp.float32)
    tw = target_weight.reshape(B, J, 1).astype(jnp.float32)
    loss = 0.0
    for idx in range(J):
        hp = pred[:, idx]
        hg = gt[:, idx]
        if has_valid:
            w = tw[:, idx]
            loss += 0.5 * jnp.mean((hp * w - hg * w) ** 2)
        else:
            loss += 0.5 * jnp.mean((hp - hg) ** 2)
    return loss / J


if __name__ == "__main__":
    key = jax.random.PRNGKey(0)

    def _run_case(B, J, H, W, dtype, rtol, atol):
        k1, k2, k3 = jax.random.split(jax.random.fold_in(key, B * 1000 + J), 3)
        output = jax.random.normal(k1, (B, J, H, W), jnp.float32).astype(dtype)
        target = jax.random.normal(k2, (B, J, H, W), jnp.float32).astype(dtype)
        tw = (jax.random.uniform(k3, (B, J, 1), jnp.float32) > 0.3).astype(jnp.float32)
        for has_valid in (True, False):
            loss = heatmap_mse_loss(output, target, tw, has_valid=has_valid)
            jax.block_until_ready(loss)
            ref = _reference_loss(output, target, tw, has_valid=has_valid)
            assert jnp.allclose(loss, ref, rtol=rtol, atol=atol), (
                B, J, dtype, has_valid, loss, ref)

    # Small shape consistent with the module: batch=2, joints=4, 16x16 heatmaps.
    _run_case(2, 4, 16, 16, jnp.float32, 1e-5, 1e-6)
    # Odd B*J (=21) exercises the masked cdiv tiling and the multi-step grid.
    _run_case(3, 7, 16, 16, jnp.float32, 1e-5, 1e-6)
    # Native bf16 heatmaps exercise the in-kernel upcast / bf16-diff path.
    _run_case(2, 4, 16, 16, jnp.bfloat16, 2e-2, 1e-3)

    print("KERNEL_OK")
</pallas_src>

<mosaic_0001>
module attributes {stable_mosaic.version = 11 : i64} {
  func.func @_partial_sq_sum_kernel(%arg0: i32, %arg1: memref<8x256xf32, #tpu.memory_space<vmem>>, %arg2: memref<8x256xf32, #tpu.memory_space<vmem>>, %arg3: memref<8x1xf32, #tpu.memory_space<vmem>>, %arg4: memref<1x1x256xf32, #tpu.memory_space<vmem>>) attributes {dimension_semantics = [#tpu.dimension_semantics<parallel>], iteration_bounds = array<i64: 1>, scalar_prefetch = 0 : i64, scratch_operands = 0 : i64, tpu.core_type = #tpu.core_type<tc>, window_params = [{transform_indices = @transform_0, window_bounds = array<i64: 8, 256>}, {transform_indices = @transform_1, window_bounds = array<i64: 8, 256>}, {transform_indices = @transform_2, window_bounds = array<i64: 8, 1>}, {transform_indices = @transform_3, window_bounds = array<i64: 1, 1, 256>}]} {
    %c0 = arith.constant 0 : index
    %c0_0 = arith.constant 0 : index
    %0 = vector.load %arg1[%c0, %c0_0] : memref<8x256xf32, #tpu.memory_space<vmem>>, vector<8x256xf32>
    %c0_1 = arith.constant 0 : index
    %c0_2 = arith.constant 0 : index
    %1 = vector.load %arg2[%c0_1, %c0_2] : memref<8x256xf32, #tpu.memory_space<vmem>>, vector<8x256xf32>
    %2 = arith.subf %0, %1 : vector<8x256xf32>
    %c0_3 = arith.constant 0 : index
    %c0_4 = arith.constant 0 : index
    %3 = vector.load %arg3[%c0_3, %c0_4] : memref<8x1xf32, #tpu.memory_space<vmem>>, vector<8x1xf32>
    %4 = vector.broadcast %3 : vector<8x1xf32> to vector<8x256xf32>
    %5 = arith.mulf %2, %4 : vector<8x256xf32>
    %6 = arith.mulf %5, %5 : vector<8x256xf32>
    %cst = arith.constant dense<0.000000e+00> : vector<256xf32>
    %7 = vector.multi_reduction <add>, %6, %cst [0] : vector<8x256xf32> to vector<256xf32>
    %8 = vector.shape_cast %7 : vector<256xf32> to vector<1x256xf32>
    %c0_5 = arith.constant 0 : index
    %c0_6 = arith.constant 0 : index
    %c0_7 = arith.constant 0 : index
    %9 = vector.load %arg4[%c0_5, %c0_6, %c0_7] : memref<1x1x256xf32, #tpu.memory_space<vmem>>, vector<1x1x256xf32>
    %10 = vector.shape_cast %9 : vector<1x1x256xf32> to vector<1x256xf32>
    %11 = vector.shape_cast %8 : vector<1x256xf32> to vector<1x1x256xf32>
    tpu.vector_store %arg4[%c0_5, %c0_6, %c0_7], %11 {strides = array<i32>} : memref<1x1x256xf32, #tpu.memory_space<vmem>>, vector<1x1x256xf32>,
    return
  }
  func.func @transform_0(%arg0: i32) -> (i32, i32) {
    %c0_i32 = arith.constant 0 : i32
    %c0_i32_0 = arith.constant 0 : i32
    return %arg0, %c0_i32 : i32, i32
  }
  func.func @transform_1(%arg0: i32) -> (i32, i32) {
    %c0_i32 = arith.constant 0 : i32
    %c0_i32_0 = arith.constant 0 : i32
    return %arg0, %c0_i32 : i32, i32
  }
  func.func @transform_2(%arg0: i32) -> (i32, i32) {
    %c0_i32 = arith.constant 0 : i32
    %c0_i32_0 = arith.constant 0 : i32
    return %arg0, %c0_i32 : i32, i32
  }
  func.func @transform_3(%arg0: i32) -> (i32, i32, i32) {
    %c0_i32 = arith.constant 0 : i32
    %c0_i32_0 = arith.constant 0 : i32
    %c0_i32_1 = arith.constant 0 : i32
    return %arg0, %c0_i32, %c0_i32_0 : i32, i32, i32
  }
}

</mosaic_0001>

<llo_original>
// kernel: tpu_custom_call.1
$region0: #{tpu_custom_call.1}
  #allocation0 [shape = 'u32[]', space=smem, size = 0x4, offset = 0x4, fixed_abs, tag = 'smem constant byte address 0x4 - core index']
  #allocation1 [shape = 'u32[72,128]{1,0:T(1,128)}', space=vmem, size = 0x9000, scoped, tag = 'internal scratch']
  %s0 = inlined_call_operand.hbm [shape: f32[8,256], index: 0, kind: input, shape index: {}]
  %s1 = inlined_call_operand.hbm [shape: f32[8,256], index: 1, kind: input, shape index: {}]
  %s2 = inlined_call_operand.vmem [shape: f32[8,1], index: 2, kind: input, shape index: {}]
  %s3 = inlined_call_operand.hbm [shape: f32[1,1,256], index: 3, kind: output, shape index: {}]
  %s4 = sld [smem:[#allocation0]]
  $region30: #{tpu_custom_call.1} parent=0
    _
  %s6 = ssub.s32 1, %s4
  %s7 = scalar_select 0, %s6, %s4
  $region1: #{tpu_custom_call.1} parent=0
    #allocation2 [shape = 'u8[8192]{0}', space=vmem, size = 0x2000, scoped, tag = 'input window, operand 0, single buffered']
    #allocation3 [shape = 's32[1]{0}', space=sflag, size = 0x4, scoped, tag = 'scoped memory for tpu_custom_call.1']
    #allocation4 [shape = 's32[1]{0}', space=sflag, size = 0x4, scoped, tag = 'scoped memory for tpu_custom_call.1']
    #allocation5 [shape = 'u8[8192]{0}', space=vmem, size = 0x2000, scoped, tag = 'input window, operand 1, single buffered']
    #allocation6 [shape = 's32[1]{0}', space=sflag, size = 0x4, scoped, tag = 'scoped memory for tpu_custom_call.1']
    #allocation7 [shape = 'u8[1024]{0}', space=vmem, size = 0x400, scoped, tag = 'output window, operand 0, single buffered']
    %8 = vsyncpa [#allocation3], 0
    %9 = vsyncpa [#allocation6], 0
    %10 = vsyncpa [#allocation4], 0
    // Predicated region
    $region2: #{tpu_custom_call.1} parent=1 // pred_check
      _
    $region3: #{tpu_custom_call.1} parent=1 // pred_check_branch
      %12 = sbr.rel (0) target = $region5
    $region4: #{tpu_custom_call.1} parent=1 // pred_region
      %14 = vsyncadd [#allocation3], 0
      %s16 = sshll.u32 %s0, 4
      %s17 = int_to_ptr.hbm [resolvable:$true] %s16
      %s18 = sshll.u32 [#allocation2], 4
      %s19 = int_to_ptr.vmem [resolvable:$true] %s18
      %21 = dma.hbm_to_vmem [thread:$0]  %s17, 256, %s19, [#allocation3]
    $region5: #{tpu_custom_call.1} parent=1 // pred_fallthru
      _
    // Predicated region
    $region6: #{tpu_custom_call.1} parent=1 // pred_check
      _
    $region7: #{tpu_custom_call.1} parent=1 // pred_check_branch
      %23 = sbr.rel (0) target = $region9
    $region8: #{tpu_custom_call.1} parent=1 // pred_region
      %25 = vsyncadd [#allocation6], 0
      %s27 = sshll.u32 %s1, 4
      %s28 = int_to_ptr.hbm [resolvable:$true] %s27
      %s29 = sshll.u32 [#allocation5], 4
      %s30 = int_to_ptr.vmem [resolvable:$true] %s29
      %32 = dma.hbm_to_vmem [thread:$0]  %s28, 256, %s30, [#allocation6]
    $region9: #{tpu_custom_call.1} parent=1 // pred_fallthru
      _
    // Predicated region
    $region10: #{tpu_custom_call.1} parent=1 // pred_check
      _
    $region11: #{tpu_custom_call.1} parent=1 // pred_check_branch
      %34 = sbr.rel (0) target = $region13
    $region12: #{tpu_custom_call.1} parent=1 // pred_region
      _
    $region13: #{tpu_custom_call.1} parent=1 // pred_fallthru
      _
    // Predicated region
    $region14: #{tpu_custom_call.1} parent=1 // pred_check
      _
    $region15: #{tpu_custom_call.1} parent=1 // pred_check_branch
      %36 = sbr.rel (0) target = $region17
    $region16: #{tpu_custom_call.1} parent=1 // pred_region
      %38 = dma.done [#allocation3], 256
    $region17: #{tpu_custom_call.1} parent=1 // pred_fallthru
      _
    // Predicated region
    $region18: #{tpu_custom_call.1} parent=1 // pred_check
      _
    $region19: #{tpu_custom_call.1} parent=1 // pred_check_branch
      %40 = sbr.rel (0) target = $region21
    $region20: #{tpu_custom_call.1} parent=1 // pred_region
      %42 = dma.done [#allocation6], 256
    $region21: #{tpu_custom_call.1} parent=1 // pred_fallthru
      _
    %v43 = vld [vmem:[#allocation2] sm:$0xff]
    %v44 = vld [vmem:[#allocation2 + $0x8] sm:$0xff]
    %v45 = vld [vmem:[#allocation5] sm:$0xff]
    %v46 = vld [vmem:[#allocation5 + $0x8] sm:$0xff]
    %v47 = vsub.f32 %v43, %v45
    %v48 = vsub.f32 %v44, %v46
    %v49 = vld [vmem:[%s2] sm:$0xff]
    %51 = vset.pattern.permute.xlu0 0
    %52 = vperm.xlu0 %51, %v49
    %v53 = vpop.permute.xlu0 %52
    %v55 = vmul.f32 %v47, %v53
    %v56 = vmul.f32 %v48, %v53
    %v57 = vmul.f32 %v55, %v55
    %v58 = vmul.f32 %v56, %v56
    %v59 = vrot.slane %v57, 4
    %v60 = vadd.f32 %v57, %v59
    %v61 = vrot.slane %v60, 2
    %v62 = vadd.f32 %v60, %v61
    %v63 = vrot.slane %v62, 1
    %v64 = vadd.f32 %v62, %v63
    %v65 = vrot.slane %v58, 4
    %v66 = vadd.f32 %v58, %v65
    %v67 = vrot.slane %v66, 2
    %v68 = vadd.f32 %v66, %v67
    %v69 = vrot.slane %v68, 1
    %v70 = vadd.f32 %v68, %v69
    %v73 = vrot.slane %v70, 7
    %vm74 = vcmask 1040384
    %v75 = vsel %vm74, %v64, %v73
    %v77 = vlaneseq
    %vm78 = vcmp.ge.s32.totalorder %v77, 0
    %vm79 = vcmp.lt.s32.totalorder %v77, 256
    %vm80 = vmand %vm78, %vm79
    %81 = vst.msk [vmem:[#allocation7] sm:$0x3] %vm80, %v75
    // Predicated region
    $region22: #{tpu_custom_call.1} parent=1 // pred_check
      _
    $region23: #{tpu_custom_call.1} parent=1 // pred_check_branch
      %83 = sbr.rel (0) target = $region25
    $region24: #{tpu_custom_call.1} parent=1 // pred_region
      %85 = vsyncadd [#allocation4], 0
      %s87 = sshll.u32 [#allocation7], 4
      %s88 = int_to_ptr.vmem [resolvable:$true] %s87
      %s89 = sshll.u32 %s3, 4
      %s90 = int_to_ptr.hbm [resolvable:$true] %s89
      %92 = dma.vmem_to_hbm [thread:$0]  %s88, 32, %s90, [#allocation4]
    $region25: #{tpu_custom_call.1} parent=1 // pred_fallthru
      _
    // Predicated region
    $region26: #{tpu_custom_call.1} parent=1 // pred_check
      _
    $region27: #{tpu_custom_call.1} parent=1 // pred_check_branch
      %94 = sbr.rel (0) target = $region29
    $region28: #{tpu_custom_call.1} parent=1 // pred_region
      %96 = dma.done [#allocation4], 32
    $region29: #{tpu_custom_call.1} parent=1 // pred_fallthru
      _
    %97 = vsyncpa [#allocation3], 1
    %98 = vsyncpa [#allocation6], 1
    %99 = vsyncpa [#allocation4], 1

</llo_original>
